<compile_context>
chip_gen: v6e
topology: v6e:2x2x1
jax: 0.10.0
libtpu: 0.0.40
codegen_flags: <defaults>
</compile_context>

<pallas_src>
import functools

import jax
import jax.numpy as jnp
from jax.experimental import pallas as pl
from jax.experimental.pallas import tpu as pltpu

_SUBLANES = 8
_LANES = 128
_NBUF = 2  # BlockSpec default double-buffering (charged in the VMEM budget)


def _round_up(x, m):
    return ((x + m - 1) // m) * m


def _triplet_partial_kernel(a_ref, p_ref, n_ref, out_ref, acc_ref, *,
                            margin, batch, feature_dim, block_rows, block_cols,
                            mask_rows, mask_cols):
    """Accumulates per-row partial sums over feature tiles; at the last
    feature tile writes a lane-dense (8,128) block holding this batch tile's
    partial sum of relu(dp - dn + margin)."""
    i = pl.program_id(0)          # batch tile
    j = pl.program_id(1)          # feature tile (reduction axis, last)

    @pl.when(j == 0)
    def _():
        acc_ref[...] = jnp.zeros_like(acc_ref)

    a = a_ref[...].astype(jnp.float32)
    p = p_ref[...].astype(jnp.float32)
    n = n_ref[...].astype(jnp.float32)

    dp = a - p
    dn = a - n
    diff = dp * dp - dn * dn                                   # (TB, TC)  VPU
    if mask_cols:
        col_ids = j * block_cols + jax.lax.broadcasted_iota(jnp.int32, diff.shape, 1)
        diff = jnp.where(col_ids < feature_dim, diff, 0.0)
    acc_ref[...] += jnp.sum(diff, axis=1, keepdims=True)       # (TB, 1)  one XLU sum

    @pl.when(j == pl.num_programs(1) - 1)
    def _():
        losses = jnp.maximum(acc_ref[...] + margin, 0.0)        # relu, VPU
        if mask_rows:
            row_ids = i * block_rows + jax.lax.broadcasted_iota(jnp.int32, losses.shape, 0)
            losses = jnp.where(row_ids < batch, losses, 0.0)
        partial = jnp.sum(losses)
        # Lane-dense, (8,128)-aligned output block (unmasked vst).
        out_ref[...] = jnp.full(out_ref.shape, partial, dtype=jnp.float32)


def _vmem_budget():
    """Generation-aware pipeline-buffer budget + explicit scoped-VMEM limit."""
    phys = 64 * 1024 * 1024  # conservative fallback = v7x per-TC VMEM
    try:
        phys = int(getattr(pltpu.get_tpu_info(), "vmem_capacity_bytes", phys))
    except Exception:
        pass
    budget = min(24 << 20, phys // 3)              # ~21 MiB v7x, 24 MiB v5e/v6e
    vmem_limit = min(phys // 2, budget + (8 << 20))
    return budget, vmem_limit


def triplet_loss(anchor, positive, negative, margin=1.0,
                 block_rows=None, block_cols=None, core_parallel=False):
    """mean(relu(||a-p||^2 - ||a-n||^2 + margin)) — matches the PyTorch module."""
    assert anchor.shape == positive.shape == negative.shape
    B, D = anchor.shape
    itemsize = jnp.dtype(anchor.dtype).itemsize
    # Sublane tile of the *input* dtype: 8 for f32, 16 for bf16, 32 for 1-byte.
    sublane_tile = _SUBLANES * max(1, 4 // itemsize)

    budget, vmem_limit = _vmem_budget()
    padded_D = _round_up(D, _LANES)
    # Physical per-row bytes: 3 inputs x _NBUF pipeline buffers at the input
    # dtype, ~3 rows of f32 up-cast intermediates, and the lane-padded
    # (block_rows, 1) f32 accumulator scratch.
    bytes_per_row_full = 3 * padded_D * (_NBUF * itemsize + 4) + _LANES * 4

    if block_cols is None:
        if sublane_tile * bytes_per_row_full <= budget:
            block_cols = D                       # no feature tiling needed
        else:
            # Very wide D: tile the feature axis in 128-lane chunks at the
            # minimum row count.
            per_128 = sublane_tile * _LANES * 3 * (_NBUF * itemsize + 4)
            block_cols = max(1, budget // per_128) * _LANES
    block_cols = int(block_cols)
    if block_cols >= D:
        block_cols = D                           # full dim: any D is legal
    else:
        block_cols = max(_LANES, (block_cols // _LANES) * _LANES)  # lane multiple

    if block_rows is None:
        padded_C = _round_up(block_cols, _LANES)
        bytes_per_row = 3 * padded_C * (_NBUF * itemsize + 4) + _LANES * 4
        tb = budget // bytes_per_row
        tb = max(sublane_tile, (tb // sublane_tile) * sublane_tile)
        block_rows = int(min(tb, _round_up(B, sublane_tile)))
    block_rows = int(block_rows)

    num_row_tiles = pl.cdiv(B, block_rows)
    num_col_tiles = pl.cdiv(D, block_cols)

    kernel = functools.partial(
        _triplet_partial_kernel,
        margin=float(margin),
        batch=B,
        feature_dim=D,
        block_rows=block_rows,
        block_cols=block_cols,
        mask_rows=(num_row_tiles * block_rows != B),
        mask_cols=(num_col_tiles * block_cols != D),
    )

    cost = pl.CostEstimate(
        flops=6 * B * D,
        transcendentals=0,
        bytes_accessed=3 * B * D * itemsize + num_row_tiles * _SUBLANES * _LANES * 4,
    )

    # v7x: shard batch tiles across the 2 TensorCores; elsewhere "parallel".
    row_sem = pltpu.CORE_PARALLEL if core_parallel else "parallel"

    partials = pl.pallas_call(
        kernel,
        out_shape=jax.ShapeDtypeStruct((num_row_tiles, _SUBLANES, _LANES), jnp.float32),
        grid=(num_row_tiles, num_col_tiles),
        in_specs=[
            pl.BlockSpec((block_rows, block_cols), lambda i, j: (i, j)),
            pl.BlockSpec((block_rows, block_cols), lambda i, j: (i, j)),
            pl.BlockSpec((block_rows, block_cols), lambda i, j: (i, j)),
        ],
        out_specs=pl.BlockSpec((1, _SUBLANES, _LANES), lambda i, j: (i, 0, 0)),
        scratch_shapes=[pltpu.VMEM((block_rows, 1), jnp.float32)],
        compiler_params=pltpu.CompilerParams(
            dimension_semantics=(row_sem, "arbitrary"),
            vmem_limit_bytes=int(vmem_limit),
        ),
        cost_estimate=cost,
    )(anchor, positive, negative)

    # Every element of each (8,128) block holds the same partial, so a dense
    # contiguous sum (no strided [:,0,0] gather) + compile-time scale is exact
    # up to f32 rounding.
    return jnp.sum(partials) * (1.0 / (B * _SUBLANES * _LANES))


def _reference(anchor, positive, negative, margin=1.0):
    a = anchor.astype(jnp.float32)
    p = positive.astype(jnp.float32)
    n = negative.astype(jnp.float32)
    dp = jnp.sum((a - p) ** 2, axis=1)
    dn = jnp.sum((a - n) ** 2, axis=1)
    return jnp.mean(jnp.maximum(dp - dn + margin, 0.0))


if __name__ == "__main__":
    key = jax.random.PRNGKey(0)

    # Case 1: small lane-aligned batch, fully auto tile config (single tile).
    B, D = 8, 128
    ka, kp, kn = jax.random.split(key, 3)
    anchor = jax.random.normal(ka, (B, D), dtype=jnp.float32)
    positive = jax.random.normal(kp, (B, D), dtype=jnp.float32)
    negative = jax.random.normal(kn, (B, D), dtype=jnp.float32)
    loss = jax.block_until_ready(triplet_loss(anchor, positive, negative, margin=1.0))
    ref = _reference(anchor, positive, negative, margin=1.0)
    assert jnp.allclose(loss, ref, rtol=1e-4, atol=1e-4), (loss, ref)

    # Case 2: ragged batch AND ragged feature dim with forced feature tiling
    # -> exercises the 2-D grid, the resident per-row accumulator, and both
    # remainder-row and remainder-column masking.
    B2, D2 = 20, 200
    k1, k2, k3 = jax.random.split(jax.random.PRNGKey(1), 3)
    anchor2 = jax.random.normal(k1, (B2, D2), dtype=jnp.float32)
    positive2 = jax.random.normal(k2, (B2, D2), dtype=jnp.float32)
    negative2 = jax.random.normal(k3, (B2, D2), dtype=jnp.float32)
    loss2 = jax.block_until_ready(
        triplet_loss(anchor2, positive2, negative2, margin=0.5,
                     block_rows=8, block_cols=128)
    )
    ref2 = _reference(anchor2, positive2, negative2, margin=0.5)
    assert jnp.allclose(loss2, ref2, rtol=1e-4, atol=1e-4), (loss2, ref2)

    # Case 3: bf16 inputs (halved HBM traffic), f32 accumulation in-kernel.
    B3, D3 = 16, 256
    k4, k5, k6 = jax.random.split(jax.random.PRNGKey(2), 3)
    anchor3 = jax.random.normal(k4, (B3, D3), dtype=jnp.bfloat16)
    positive3 = jax.random.normal(k5, (B3, D3), dtype=jnp.bfloat16)
    negative3 = jax.random.normal(k6, (B3, D3), dtype=jnp.bfloat16)
    loss3 = jax.block_until_ready(triplet_loss(anchor3, positive3, negative3, margin=1.0))
    ref3 = _reference(anchor3, positive3, negative3, margin=1.0)
    assert jnp.allclose(loss3, ref3, rtol=1e-4, atol=1e-4), (loss3, ref3)

    print("KERNEL_OK")
</pallas_src>

<mosaic_0001>
module attributes {stable_mosaic.version = 11 : i64} {
  func.func @_triplet_partial_kernel(%arg0: i32, %arg1: i32, %arg2: memref<8x128xf32, #tpu.memory_space<vmem>>, %arg3: memref<8x128xf32, #tpu.memory_space<vmem>>, %arg4: memref<8x128xf32, #tpu.memory_space<vmem>>, %arg5: memref<1x8x128xf32, #tpu.memory_space<vmem>>, %arg6: memref<8x1xf32, #tpu.memory_space<vmem>>) attributes {dimension_semantics = [#tpu.dimension_semantics<parallel>, #tpu.dimension_semantics<arbitrary>], iteration_bounds = array<i64: 1, 1>, scalar_prefetch = 0 : i64, scratch_operands = 1 : i64, tpu.core_type = #tpu.core_type<tc>, window_params = [{transform_indices = @transform_0, window_bounds = array<i64: 8, 128>}, {transform_indices = @transform_1, window_bounds = array<i64: 8, 128>}, {transform_indices = @transform_2, window_bounds = array<i64: 8, 128>}, {transform_indices = @transform_3, window_bounds = array<i64: 1, 8, 128>}]} {
    %c0_i32 = arith.constant 0 : i32
    %0 = arith.cmpi eq, %arg1, %c0_i32 : i32
    %1 = arith.extui %0 : i1 to i32
    %c0_i32_0 = arith.constant 0 : i32
    %2 = arith.cmpi ne, %1, %c0_i32_0 : i32
    scf.if %2 {
      %cst_12 = arith.constant 0.000000e+00 : f32
      %19 = vector.broadcast %cst_12 : f32 to vector<8x1xf32>
      %c0_13 = arith.constant 0 : index
      %c0_14 = arith.constant 0 : index
      %20 = vector.load %arg6[%c0_13, %c0_14] : memref<8x1xf32, #tpu.memory_space<vmem>>, vector<8x1xf32>
      tpu.vector_store %arg6[%c0_13, %c0_14], %19 {strides = array<i32>} : memref<8x1xf32, #tpu.memory_space<vmem>>, vector<8x1xf32>,
    } else {
    }
    %c0 = arith.constant 0 : index
    %c0_1 = arith.constant 0 : index
    %3 = vector.load %arg2[%c0, %c0_1] : memref<8x128xf32, #tpu.memory_space<vmem>>, vector<8x128xf32>
    %c0_2 = arith.constant 0 : index
    %c0_3 = arith.constant 0 : index
    %4 = vector.load %arg3[%c0_2, %c0_3] : memref<8x128xf32, #tpu.memory_space<vmem>>, vector<8x128xf32>
    %c0_4 = arith.constant 0 : index
    %c0_5 = arith.constant 0 : index
    %5 = vector.load %arg4[%c0_4, %c0_5] : memref<8x128xf32, #tpu.memory_space<vmem>>, vector<8x128xf32>
    %6 = arith.subf %3, %4 : vector<8x128xf32>
    %7 = arith.subf %3, %5 : vector<8x128xf32>
    %8 = arith.mulf %6, %6 : vector<8x128xf32>
    %9 = arith.mulf %7, %7 : vector<8x128xf32>
    %10 = arith.subf %8, %9 : vector<8x128xf32>
    %c0_6 = arith.constant 0 : index
    %c0_7 = arith.constant 0 : index
    %11 = vector.load %arg6[%c0_6, %c0_7] : memref<8x1xf32, #tpu.memory_space<vmem>>, vector<8x1xf32>
    %cst = arith.constant dense<0.000000e+00> : vector<8xf32>
    %12 = vector.multi_reduction <add>, %10, %cst [1] : vector<8x128xf32> to vector<8xf32>
    %13 = vector.shape_cast %12 : vector<8xf32> to vector<8x1xf32>
    %14 = arith.addf %11, %13 : vector<8x1xf32>
    %c0_8 = arith.constant 0 : index
    %c0_9 = arith.constant 0 : index
    %15 = vector.load %arg6[%c0_8, %c0_9] : memref<8x1xf32, #tpu.memory_space<vmem>>, vector<8x1xf32>
    tpu.vector_store %arg6[%c0_8, %c0_9], %14 {strides = array<i32>} : memref<8x1xf32, #tpu.memory_space<vmem>>, vector<8x1xf32>,
    %c0_i32_10 = arith.constant 0 : i32
    %16 = arith.cmpi eq, %arg1, %c0_i32_10 : i32
    %17 = arith.extui %16 : i1 to i32
    %c0_i32_11 = arith.constant 0 : i32
    %18 = arith.cmpi ne, %17, %c0_i32_11 : i32
    scf.if %18 {
      %c0_12 = arith.constant 0 : index
      %c0_13 = arith.constant 0 : index
      %19 = vector.load %arg6[%c0_12, %c0_13] : memref<8x1xf32, #tpu.memory_space<vmem>>, vector<8x1xf32>
      %cst_14 = arith.constant 1.000000e+00 : f32
      %20 = vector.broadcast %cst_14 : f32 to vector<8x1xf32>
      %21 = arith.addf %19, %20 : vector<8x1xf32>
      %cst_15 = arith.constant 0.000000e+00 : f32
      %22 = vector.broadcast %cst_15 : f32 to vector<8x1xf32>
      %23 = arith.maximumf %21, %22 : vector<8x1xf32>
      %24 = vector.shape_cast %23 : vector<8x1xf32> to vector<1x8x1xf32>
      %cst_16 = arith.constant dense<0.000000e+00> : vector<1xf32>
      %25 = vector.multi_reduction <add>, %24, %cst_16 [1, 2] : vector<1x8x1xf32> to vector<1xf32>
      %26 = vector.shape_cast %25 : vector<1xf32> to vector<1x1x1xf32>
      %27 = vector.extract %26[0, 0, 0] : f32 from vector<1x1x1xf32>
      %28 = vector.broadcast %27 : f32 to vector<1x8x128xf32>
      %c0_17 = arith.constant 0 : index
      %c0_18 = arith.constant 0 : index
      %c0_19 = arith.constant 0 : index
      %29 = vector.load %arg5[%c0_17, %c0_18, %c0_19] : memref<1x8x128xf32, #tpu.memory_space<vmem>>, vector<1x8x128xf32>
      tpu.vector_store %arg5[%c0_17, %c0_18, %c0_19], %28 {strides = array<i32>} : memref<1x8x128xf32, #tpu.memory_space<vmem>>, vector<1x8x128xf32>,
    } else {
    }
    return
  }
  func.func @transform_0(%arg0: i32, %arg1: i32) -> (i32, i32) {
    %c0_i32 = arith.constant 0 : i32
    return %arg0, %arg1 : i32, i32
  }
  func.func @transform_1(%arg0: i32, %arg1: i32) -> (i32, i32) {
    %c0_i32 = arith.constant 0 : i32
    return %arg0, %arg1 : i32, i32
  }
  func.func @transform_2(%arg0: i32, %arg1: i32) -> (i32, i32) {
    %c0_i32 = arith.constant 0 : i32
    return %arg0, %arg1 : i32, i32
  }
  func.func @transform_3(%arg0: i32, %arg1: i32) -> (i32, i32, i32) {
    %c0_i32 = arith.constant 0 : i32
    %c0_i32_0 = arith.constant 0 : i32
    %c0_i32_1 = arith.constant 0 : i32
    return %arg0, %c0_i32, %c0_i32_0 : i32, i32, i32
  }
}

</mosaic_0001>

<llo_original>
// kernel: tpu_custom_call.1
$region0: #{tpu_custom_call.1}
  #allocation0 [shape = 'u32[]', space=smem, size = 0x4, offset = 0x4, fixed_abs, tag = 'smem constant byte address 0x4 - core index']
  #allocation1 [shape = 'u32[144,128]{1,0:T(1,128)}', space=vmem, size = 0x12000, scoped, tag = 'internal scratch']
  #allocation2 [shape = 'f32[8,1]{1,0:T(8,128)}', space=vmem, size = 0x1000, scoped, tag = 'scratch operand']
  %s0 = inlined_call_operand.hbm [shape: f32[8,128], index: 0, kind: input, shape index: {}]
  %s1 = inlined_call_operand.hbm [shape: f32[8,128], index: 1, kind: input, shape index: {}]
  %s2 = inlined_call_operand.hbm [shape: f32[8,128], index: 2, kind: input, shape index: {}]
  %s3 = inlined_call_operand.hbm [shape: f32[1,8,128], index: 3, kind: output, shape index: {}]
  %s4 = sld [smem:[#allocation0]]
  $region42: #{tpu_custom_call.1} parent=0
    _
  %s6 = ssub.s32 1, %s4
  %s7 = scalar_select 0, %s6, %s4
  $region1: #{tpu_custom_call.1} parent=0
    #allocation3 [shape = 'u8[4096]{0}', space=vmem, size = 0x1000, scoped, tag = 'input window, operand 0, single buffered']
    #allocation4 [shape = 's32[1]{0}', space=sflag, size = 0x4, scoped, tag = 'scoped memory for tpu_custom_call.1']
    #allocation5 [shape = 's32[1]{0}', space=sflag, size = 0x4, scoped, tag = 'scoped memory for tpu_custom_call.1']
    #allocation6 [shape = 'u8[4096]{0}', space=vmem, size = 0x1000, scoped, tag = 'input window, operand 1, single buffered']
    #allocation7 [shape = 's32[1]{0}', space=sflag, size = 0x4, scoped, tag = 'scoped memory for tpu_custom_call.1']
    #allocation8 [shape = 'u8[4096]{0}', space=vmem, size = 0x1000, scoped, tag = 'input window, operand 2, single buffered']
    #allocation9 [shape = 'u8[4096]{0}', space=vmem, size = 0x1000, scoped, tag = 'output window, operand 0, single buffered']
    %8 = vsyncpa [#allocation4], 0
    %9 = vsyncpa [#allocation7], 0
    %10 = vsyncpa [#allocation5], 0
    // Predicated region
    $region2: #{tpu_custom_call.1} parent=1 // pred_check
      _
    $region3: #{tpu_custom_call.1} parent=1 // pred_check_branch
      %12 = sbr.rel (0) target = $region5
    $region4: #{tpu_custom_call.1} parent=1 // pred_region
      %s14 = ssub.s32 128, 128
      %15 = vsyncadd [#allocation4], %s14
      %s17 = sshll.u32 [#allocation3], 4
      %s18 = int_to_ptr.vmem [resolvable:$true] %s17
      %20 = dma.hbm_to_vmem [thread:$0]  %s0, 128, %s18, [#allocation4]
    $region5: #{tpu_custom_call.1} parent=1 // pred_fallthru
      _
    // Predicated region
    $region6: #{tpu_custom_call.1} parent=1 // pred_check
      _
    $region7: #{tpu_custom_call.1} parent=1 // pred_check_branch
      %22 = sbr.rel (0) target = $region9
    $region8: #{tpu_custom_call.1} parent=1 // pred_region
      %s24 = ssub.s32 128, 128
      %25 = vsyncadd [#allocation7], %s24
      %s27 = sshll.u32 [#allocation6], 4
      %s28 = int_to_ptr.vmem [resolvable:$true] %s27
      %30 = dma.hbm_to_vmem [thread:$0]  %s1, 128, %s28, [#allocation7]
    $region9: #{tpu_custom_call.1} parent=1 // pred_fallthru
      _
    // Predicated region
    $region10: #{tpu_custom_call.1} parent=1 // pred_check
      _
    $region11: #{tpu_custom_call.1} parent=1 // pred_check_branch
      %32 = sbr.rel (0) target = $region13
    $region12: #{tpu_custom_call.1} parent=1 // pred_region
      %s34 = ssub.s32 128, 128
      %35 = vsyncadd [#allocation7], %s34
      %s37 = sshll.u32 [#allocation8], 4
      %s38 = int_to_ptr.vmem [resolvable:$true] %s37
      %40 = dma.hbm_to_vmem [thread:$0]  %s2, 128, %s38, [#allocation7]
    $region13: #{tpu_custom_call.1} parent=1 // pred_fallthru
      _
    // Predicated region
    $region14: #{tpu_custom_call.1} parent=1 // pred_check
      _
    $region15: #{tpu_custom_call.1} parent=1 // pred_check_branch
      %42 = sbr.rel (0) target = $region17
    $region16: #{tpu_custom_call.1} parent=1 // pred_region
      %43 = dma.done [#allocation4], 128
    $region17: #{tpu_custom_call.1} parent=1 // pred_fallthru
      _
    // Predicated region
    $region18: #{tpu_custom_call.1} parent=1 // pred_check
      _
    $region19: #{tpu_custom_call.1} parent=1 // pred_check_branch
      %45 = sbr.rel (0) target = $region21
    $region20: #{tpu_custom_call.1} parent=1 // pred_region
      %46 = dma.done [#allocation7], 128
    $region21: #{tpu_custom_call.1} parent=1 // pred_fallthru
      _
    // Predicated region
    $region22: #{tpu_custom_call.1} parent=1 // pred_check
      _
    $region23: #{tpu_custom_call.1} parent=1 // pred_check_branch
      %48 = sbr.rel (0) target = $region25
    $region24: #{tpu_custom_call.1} parent=1 // pred_region
      %49 = dma.done [#allocation7], 128
    $region25: #{tpu_custom_call.1} parent=1 // pred_fallthru
      _
    %p50 = scmp.eq.s32.totalorder 0, 0
    // Predicated region
    $region26: #{tpu_custom_call.1} parent=1 // pred_check
      %p51 = pneg %p50
    $region27: #{tpu_custom_call.1} parent=1 // pred_check_branch
      %53 = sbr.rel (%p51) target = $region29
    $region28: #{tpu_custom_call.1} parent=1 // pred_region
      %vm54 = vcmask 7168
      %55 = vst.msk [vmem:[#allocation2] sm:$0xff] %vm54, 0.0
    $region29: #{tpu_custom_call.1} parent=1 // pred_fallthru
      _
    %v56 = vld [vmem:[#allocation3] sm:$0xff]
    %v57 = vld [vmem:[#allocation6] sm:$0xff]
    %v58 = vld [vmem:[#allocation8] sm:$0xff]
    %v59 = vsub.f32 %v56, %v57
    %v60 = vsub.f32 %v56, %v58
    %v61 = vmul.f32 %v59, %v59
    %v62 = vmul.f32 %v60, %v60
    %v63 = vsub.f32 %v61, %v62
    %v64 = vld [vmem:[#allocation2] sm:$0xff]
    %65 = vadd.xlane.f32.xlu0 %v63
    %v66 = vpop.xlane.xlu0 %65
    %v67 = vadd.f32 %v64, %v66
    %vm68 = vcmask 7168
    %69 = vst.msk [vmem:[#allocation2] sm:$0xff] %vm68, %v67
    // Predicated region
    $region30: #{tpu_custom_call.1} parent=1 // pred_check
      %p70 = pneg %p50
    $region31: #{tpu_custom_call.1} parent=1 // pred_check_branch
      %72 = sbr.rel (%p70) target = $region33
    $region32: #{tpu_custom_call.1} parent=1 // pred_region
      %v73 = vld [vmem:[#allocation2] sm:$0xff]
      %v74 = vadd.f32 %v73, 1.0
      %v75 = vmax.f32 %v74, 0.0
      %v76 = vsel %vm68, %v75, 0.0
      %77 = vadd.xlane.f32.xlu0 %v76
      %v78 = vpop.xlane.xlu0 %77
      %v79 = vrot.slane %v78, 4
      %v80 = vadd.f32 %v78, %v79
      %v81 = vrot.slane %v80, 2
      %v82 = vadd.f32 %v80, %v81
      %v83 = vrot.slane %v82, 1
      %v84 = vadd.f32 %v82, %v83
      %s85 = vtos %v84
      %v86 = vstv %s85
      %87 = vst [vmem:[#allocation9] sm:$0xff] %v86
    $region33: #{tpu_custom_call.1} parent=1 // pred_fallthru
      _
    // Predicated region
    $region34: #{tpu_custom_call.1} parent=1 // pred_check
      _
    $region35: #{tpu_custom_call.1} parent=1 // pred_check_branch
      %89 = sbr.rel (0) target = $region37
    $region36: #{tpu_custom_call.1} parent=1 // pred_region
      %s91 = ssub.s32 128, 128
      %92 = vsyncadd [#allocation5], %s91
      %s94 = sshll.u32 [#allocation9], 4
      %s95 = int_to_ptr.vmem [resolvable:$true] %s94
      %97 = dma.vmem_to_hbm [thread:$0]  %s95, 128, %s3, [#allocation5]
    $region37: #{tpu_custom_call.1} parent=1 // pred_fallthru
      _
    // Predicated region
    $region38: #{tpu_custom_call.1} parent=1 // pred_check
      _
    $region39: #{tpu_custom_call.1} parent=1 // pred_check_branch
      %99 = sbr.rel (0) target = $region41
    $region40: #{tpu_custom_call.1} parent=1 // pred_region
      %100 = dma.done [#allocation5], 128
    $region41: #{tpu_custom_call.1} parent=1 // pred_fallthru
      _
    %101 = vsyncpa [#allocation4], 1
    %102 = vsyncpa [#allocation7], 1
    %103 = vsyncpa [#allocation5], 1

</llo_original>
